<compile_context>
chip_gen: v6e
topology: v6e:2x2x1
jax: 0.10.0
libtpu: 0.0.40
codegen_flags: <defaults>
</compile_context>

<pallas_src>
import functools

import jax
import jax.numpy as jnp
from jax import lax
from jax.experimental import pallas as pl
from jax.experimental.pallas import tpu as pltpu


def _round_up(x, m):
    return ((x + m - 1) // m) * m


def _vmem_plan_bytes():
    """(vmem_limit_bytes, planning_budget) sized to the actual generation."""
    try:
        cap = pltpu.get_tpu_info().vmem_capacity_bytes
    except Exception:  # pragma: no cover - defensive fallback
        cap = 64 * 1024 * 1024  # conservative (v7x-sized)
    limit = max(cap - 16 * 1024 * 1024, 32 * 1024 * 1024)  # headroom for Mosaic
    budget = int(limit * 0.70)  # our explicit buffers; rest for temporaries
    return limit, budget


# --------------------------------------------------------------------------
# Kernels
# --------------------------------------------------------------------------

def _kpanel_kernel(has_bias, *refs):
    """Resident-K-panel path: one grid step per output tile, full-K dot.

    x_ref: (tm, K), w_ref: (tn, K)  ->  o_ref: (tm, tn)
    """
    if has_bias:
        x_ref, w_ref, b_ref, o_ref = refs
    else:
        x_ref, w_ref, o_ref = refs
        b_ref = None
    acc = lax.dot_general(
        x_ref[...],
        w_ref[...],
        dimension_numbers=(((1,), (1,)), ((), ())),  # contract K of both (no W.T copy)
        preferred_element_type=jnp.float32,
    )
    if b_ref is not None:
        acc = acc + b_ref[...].astype(jnp.float32)
    o_ref[...] = acc.astype(o_ref.dtype)


def _ksplit_kernel(has_bias, *refs):
    """Fallback for very large K: K is the innermost (reduction) grid axis."""
    if has_bias:
        x_ref, w_ref, b_ref, o_ref, acc_ref = refs
    else:
        x_ref, w_ref, o_ref, acc_ref = refs
        b_ref = None

    k = pl.program_id(2)
    part = lax.dot_general(
        x_ref[...],
        w_ref[...],
        dimension_numbers=(((1,), (1,)), ((), ())),
        preferred_element_type=jnp.float32,
    )

    @pl.when(k == 0)
    def _():
        acc_ref[...] = part  # write-first: no zero-init + += on step 0

    @pl.when(k > 0)
    def _():
        acc_ref[...] += part

    @pl.when(k == pl.num_programs(2) - 1)
    def _():
        out = acc_ref[...]
        if b_ref is not None:
            out = out + b_ref[...].astype(jnp.float32)
        o_ref[...] = out.astype(o_ref.dtype)


# --------------------------------------------------------------------------
# Wrapper
# --------------------------------------------------------------------------

def te_linear(x, weight, bias=None, *, vmem_budget_bytes=None):
    """y = x @ weight.T + bias   (weight: (out_features, in_features))."""
    *lead, K = x.shape
    N, K_w = weight.shape
    assert K == K_w, "in_features mismatch"

    out_dtype = x.dtype
    M = 1
    for d in lead:
        M *= d
    x2d = x.reshape(M, K)

    has_bias = bias is not None
    b2d = bias.reshape(1, N) if has_bias else None
    b_bytes = jnp.dtype(bias.dtype).itemsize if has_bias else 0

    x_bytes = jnp.dtype(x.dtype).itemsize
    w_bytes = jnp.dtype(weight.dtype).itemsize
    o_bytes = jnp.dtype(out_dtype).itemsize

    vmem_limit, budget = _vmem_plan_bytes()
    if vmem_budget_bytes is not None:  # test hook / manual override
        budget = int(vmem_budget_bytes)

    cost = pl.CostEstimate(
        flops=2 * M * N * K,
        transcendentals=0,
        bytes_accessed=M * K * x_bytes + N * K * w_bytes + M * N * o_bytes
        + (N * b_bytes if has_bias else 0),
    )

    tm_cap = _round_up(M, 8)     # sublane alignment; no full-tile M padding
    tn_cap = _round_up(N, 128)   # lane alignment

    # ---------------- Path A: resident K-panel (preferred) ----------------
    def _kpanel_fits(tm, tn):
        foot = 2 * (tm * K * x_bytes + tn * K * w_bytes)   # double-buffered inputs
        foot += 2 * tm * tn * o_bytes                      # double-buffered out tile
        foot += tm * tn * 4                                # f32 matmul temporary
        if has_bias:
            foot += 2 * tn * b_bytes
        return foot <= budget

    plan = None
    for tm_c, tn_c in ((512, 1024), (512, 512), (256, 512), (256, 256),
                       (128, 256), (128, 128), (64, 128), (32, 128),
                       (16, 128), (8, 128)):
        tm = min(tm_c, tm_cap)
        tn = min(tn_c, tn_cap)
        if _kpanel_fits(tm, tn):
            plan = (tm, tn)
            break

    if plan is not None:
        tm, tn = plan
        grid = (pl.cdiv(M, tm), pl.cdiv(N, tn))  # j (N) innermost -> x stays resident
        in_specs = [
            pl.BlockSpec((tm, K), lambda i, j: (i, 0)),   # activation K-panel
            pl.BlockSpec((tn, K), lambda i, j: (j, 0)),   # weight K-panel (no .T)
        ]
        args = [x2d, weight]
        if has_bias:
            in_specs.append(pl.BlockSpec((1, tn), lambda i, j: (0, j)))
            args.append(b2d)

        out = pl.pallas_call(
            functools.partial(_kpanel_kernel, has_bias),
            out_shape=jax.ShapeDtypeStruct((M, N), out_dtype),
            grid_spec=pltpu.PrefetchScalarGridSpec(
                num_scalar_prefetch=0,
                grid=grid,
                in_specs=in_specs,
                out_specs=pl.BlockSpec((tm, tn), lambda i, j: (i, j)),
            ),
            compiler_params=pltpu.CompilerParams(
                dimension_semantics=("parallel", "parallel"),
                vmem_limit_bytes=vmem_limit,
            ),
            cost_estimate=cost,
        )(*args)
        return out.reshape(*lead, N)

    # ---------------- Path B: K-split reduction (huge K only) -------------
    tm = min(512, tm_cap)
    tn = min(512, tn_cap)
    tk = None
    for tk_c in (4096, 2048, 1024, 512, 256, 128):
        tk_try = min(tk_c, _round_up(K, 128))
        foot = 2 * (tm * tk_try * x_bytes + tn * tk_try * w_bytes)
        foot += 2 * tm * tn * o_bytes + tm * tn * 4
        if has_bias:
            foot += 2 * tn * b_bytes
        if foot <= budget:
            tk = tk_try
            break
    if tk is None:
        tk = 128

    # K must be zero-padded to a tk multiple (zeros keep the reduction exact).
    Kp = _round_up(K, tk)
    xk = x2d if Kp == K else jnp.pad(x2d, ((0, 0), (0, Kp - K)))
    wk = weight if Kp == K else jnp.pad(weight, ((0, 0), (0, Kp - K)))

    grid = (pl.cdiv(M, tm), pl.cdiv(N, tn), Kp // tk)
    in_specs = [
        pl.BlockSpec((tm, tk), lambda i, j, k: (i, k)),
        pl.BlockSpec((tn, tk), lambda i, j, k: (j, k)),
    ]
    args = [xk, wk]
    if has_bias:
        in_specs.append(pl.BlockSpec((1, tn), lambda i, j, k: (0, j)))
        args.append(b2d)

    out = pl.pallas_call(
        functools.partial(_ksplit_kernel, has_bias),
        out_shape=jax.ShapeDtypeStruct((M, N), out_dtype),
        grid_spec=pltpu.PrefetchScalarGridSpec(
            num_scalar_prefetch=0,
            grid=grid,
            in_specs=in_specs,
            out_specs=pl.BlockSpec((tm, tn), lambda i, j, k: (i, j)),
            scratch_shapes=[pltpu.VMEM((tm, tn), jnp.float32)],
        ),
        compiler_params=pltpu.CompilerParams(
            dimension_semantics=("parallel", "parallel", "arbitrary"),
            vmem_limit_bytes=vmem_limit,
        ),
        cost_estimate=cost,
    )(*args)
    return out.reshape(*lead, N)


def reference_linear(x, weight, bias=None):
    xf = x.astype(jnp.float32)
    wf = weight.astype(jnp.float32)
    y = jnp.einsum("...k,nk->...n", xf, wf)
    if bias is not None:
        y = y + bias.astype(jnp.float32)
    return y


if __name__ == "__main__":
    key = jax.random.PRNGKey(0)

    # --- Test 1: small aligned shapes, float32 (resident K-panel path) ---
    batch, seq = 2, 8
    in_features, out_features = 128, 256
    k1, k2, k3, key = jax.random.split(key, 4)
    bound = 1.0 / jnp.sqrt(jnp.float32(in_features))
    x = jax.random.normal(k1, (batch, seq, in_features), dtype=jnp.float32)
    weight = jax.random.uniform(
        k2, (out_features, in_features), minval=-bound, maxval=bound,
        dtype=jnp.float32,
    )
    bias = jax.random.uniform(
        k3, (out_features,), minval=-bound, maxval=bound, dtype=jnp.float32
    )
    y = te_linear(x, weight, bias)
    jax.block_until_ready(y)
    y_ref = reference_linear(x, weight, bias)
    assert y.shape == (batch, seq, out_features)
    assert jnp.allclose(y, y_ref, atol=1e-4, rtol=1e-4)

    # --- Test 2: non-aligned shapes (edge-block clipping, no jnp.pad), f32 ---
    b2, s2, k_in2, n_out2 = 2, 7, 96, 200
    k1, k2, k3, key = jax.random.split(key, 4)
    bound2 = 1.0 / jnp.sqrt(jnp.float32(k_in2))
    x2 = jax.random.normal(k1, (b2, s2, k_in2), dtype=jnp.float32)
    w2 = jax.random.uniform(
        k2, (n_out2, k_in2), minval=-bound2, maxval=bound2, dtype=jnp.float32
    )
    bz2 = jax.random.uniform(
        k3, (n_out2,), minval=-bound2, maxval=bound2, dtype=jnp.float32
    )
    y2 = te_linear(x2, w2, bz2)
    jax.block_until_ready(y2)
    y2_ref = reference_linear(x2, w2, bz2)
    assert y2.shape == (b2, s2, n_out2)
    assert jnp.allclose(y2, y2_ref, atol=1e-4, rtol=1e-4)

    # --- Test 3: bfloat16 inputs ---
    k1, k2, k3, key = jax.random.split(key, 4)
    x3 = jax.random.normal(k1, (batch, seq, in_features)).astype(jnp.bfloat16)
    w3 = jax.random.uniform(
        k2, (out_features, in_features), minval=-bound, maxval=bound
    ).astype(jnp.bfloat16)
    b3 = jax.random.uniform(
        k3, (out_features,), minval=-bound, maxval=bound
    ).astype(jnp.bfloat16)
    y3 = te_linear(x3, w3, b3)
    jax.block_until_ready(y3)
    y3_ref = reference_linear(x3, w3, b3)
    assert y3.shape == (batch, seq, out_features)
    assert jnp.allclose(y3.astype(jnp.float32), y3_ref, atol=5e-2, rtol=5e-2)

    # --- Test 4: bias=None (no bias stream) ---
    y4 = te_linear(x, weight, None)
    jax.block_until_ready(y4)
    y4_ref = reference_linear(x, weight, None)
    assert jnp.allclose(y4, y4_ref, atol=1e-4, rtol=1e-4)

    # --- Test 5: force the K-split fallback path via a tiny planning budget ---
    b5, s5, k_in5, n_out5 = 4, 16, 384, 256
    k1, k2, k3, key = jax.random.split(key, 4)
    bound5 = 1.0 / jnp.sqrt(jnp.float32(k_in5))
    x5 = jax.random.normal(k1, (b5, s5, k_in5), dtype=jnp.float32)
    w5 = jax.random.uniform(
        k2, (n_out5, k_in5), minval=-bound5, maxval=bound5, dtype=jnp.float32
    )
    bz5 = jax.random.uniform(
        k3, (n_out5,), minval=-bound5, maxval=bound5, dtype=jnp.float32
    )
    y5 = te_linear(x5, w5, bz5, vmem_budget_bytes=64 * 1024)
    jax.block_until_ready(y5)
    y5_ref = reference_linear(x5, w5, bz5)
    assert y5.shape == (b5, s5, n_out5)
    assert jnp.allclose(y5, y5_ref, atol=1e-3, rtol=1e-3)

    print("KERNEL_OK")
</pallas_src>

<mosaic_0001>
module attributes {stable_mosaic.version = 11 : i64} {
  func.func @_kpanel_kernel(%arg0: i32, %arg1: i32, %arg2: memref<16x128xf32, #tpu.memory_space<vmem>>, %arg3: memref<256x128xf32, #tpu.memory_space<vmem>>, %arg4: memref<1x256xf32, #tpu.memory_space<vmem>>, %arg5: memref<16x256xf32, #tpu.memory_space<vmem>>) attributes {dimension_semantics = [#tpu.dimension_semantics<parallel>, #tpu.dimension_semantics<parallel>], iteration_bounds = array<i64: 1, 1>, scalar_prefetch = 0 : i64, scratch_operands = 0 : i64, tpu.core_type = #tpu.core_type<tc>, window_params = [{transform_indices = @transform_0, window_bounds = array<i64: 16, 128>}, {transform_indices = @transform_1, window_bounds = array<i64: 256, 128>}, {transform_indices = @transform_2, window_bounds = array<i64: 1, 256>}, {transform_indices = @transform_3, window_bounds = array<i64: 16, 256>}]} {
    %c0 = arith.constant 0 : index
    %c0_0 = arith.constant 0 : index
    %0 = vector.load %arg2[%c0, %c0_0] : memref<16x128xf32, #tpu.memory_space<vmem>>, vector<16x128xf32>
    %c0_1 = arith.constant 0 : index
    %c0_2 = arith.constant 0 : index
    %1 = vector.load %arg3[%c0_1, %c0_2] : memref<256x128xf32, #tpu.memory_space<vmem>>, vector<256x128xf32>
    %cst = arith.constant dense<0.000000e+00> : vector<16x256xf32>
    %2 = tpu.matmul %0, %1, %cst {dimension_numbers = #tpu.dot_dimension_numbers<[1], [1], [0], [0], [0, 0, 1, 0], [], []>} : vector<16x128xf32>, vector<256x128xf32>, vector<16x256xf32> -> vector<16x256xf32>
    %c0_3 = arith.constant 0 : index
    %c0_4 = arith.constant 0 : index
    %3 = vector.load %arg4[%c0_3, %c0_4] : memref<1x256xf32, #tpu.memory_space<vmem>>, vector<1x256xf32>
    %4 = vector.broadcast %3 : vector<1x256xf32> to vector<16x256xf32>
    %5 = arith.addf %2, %4 : vector<16x256xf32>
    %c0_5 = arith.constant 0 : index
    %c0_6 = arith.constant 0 : index
    %6 = vector.load %arg5[%c0_5, %c0_6] : memref<16x256xf32, #tpu.memory_space<vmem>>, vector<16x256xf32>
    tpu.vector_store %arg5[%c0_5, %c0_6], %5 {strides = array<i32>} : memref<16x256xf32, #tpu.memory_space<vmem>>, vector<16x256xf32>,
    return
  }
  func.func @transform_0(%arg0: i32, %arg1: i32) -> (i32, i32) {
    %c0_i32 = arith.constant 0 : i32
    %c0_i32_0 = arith.constant 0 : i32
    return %arg0, %c0_i32 : i32, i32
  }
  func.func @transform_1(%arg0: i32, %arg1: i32) -> (i32, i32) {
    %c0_i32 = arith.constant 0 : i32
    %c0_i32_0 = arith.constant 0 : i32
    return %arg1, %c0_i32 : i32, i32
  }
  func.func @transform_2(%arg0: i32, %arg1: i32) -> (i32, i32) {
    %c0_i32 = arith.constant 0 : i32
    %c0_i32_0 = arith.constant 0 : i32
    return %c0_i32, %arg1 : i32, i32
  }
  func.func @transform_3(%arg0: i32, %arg1: i32) -> (i32, i32) {
    %c0_i32 = arith.constant 0 : i32
    return %arg0, %arg1 : i32, i32
  }
}

</mosaic_0001>

<llo_original>
// kernel: tpu_custom_call.1
$region0: #{tpu_custom_call.1}
  #allocation0 [shape = 'u32[]', space=smem, size = 0x4, offset = 0x4, fixed_abs, tag = 'smem constant byte address 0x4 - core index']
  #allocation1 [shape = 'u32[144,128]{1,0:T(1,128)}', space=vmem, size = 0x12000, scoped, tag = 'internal scratch']
  %s0 = inlined_call_operand.hbm [shape: f32[16,128], index: 0, kind: input, shape index: {}]
  %s1 = inlined_call_operand.hbm [shape: f32[256,128], index: 1, kind: input, shape index: {}]
  %s2 = inlined_call_operand.vmem [shape: f32[1,256], index: 2, kind: input, shape index: {}]
  %s3 = inlined_call_operand.hbm [shape: f32[16,256], index: 3, kind: output, shape index: {}]
  %s4 = sld [smem:[#allocation0]]
  $region30: #{tpu_custom_call.1} parent=0
    _
  %s6 = ssub.s32 1, %s4
  %s7 = scalar_select 0, %s6, %s4
  $region1: #{tpu_custom_call.1} parent=0
    #allocation2 [shape = 'u8[8192]{0}', space=vmem, size = 0x2000, scoped, tag = 'input window, operand 0, single buffered']
    #allocation3 [shape = 's32[1]{0}', space=sflag, size = 0x4, scoped, tag = 'scoped memory for tpu_custom_call.1']
    #allocation4 [shape = 's32[1]{0}', space=sflag, size = 0x4, scoped, tag = 'scoped memory for tpu_custom_call.1']
    #allocation5 [shape = 'u8[131072]{0}', space=vmem, size = 0x20000, scoped, tag = 'input window, operand 1, single buffered']
    #allocation6 [shape = 's32[1]{0}', space=sflag, size = 0x4, scoped, tag = 'scoped memory for tpu_custom_call.1']
    #allocation7 [shape = 'u8[16384]{0}', space=vmem, size = 0x4000, scoped, tag = 'output window, operand 0, single buffered']
    %8 = vsyncpa [#allocation3], 0
    %9 = vsyncpa [#allocation6], 0
    %10 = vsyncpa [#allocation4], 0
    // Predicated region
    $region2: #{tpu_custom_call.1} parent=1 // pred_check
      _
    $region3: #{tpu_custom_call.1} parent=1 // pred_check_branch
      %12 = sbr.rel (0) target = $region5
    $region4: #{tpu_custom_call.1} parent=1 // pred_region
      %s14 = ssub.s32 256, 256
      %15 = vsyncadd [#allocation3], %s14
      %s16 = sshll.u32 [#allocation2], 4
      %s17 = int_to_ptr.vmem [resolvable:$true] %s16
      %22 = dma.hbm_to_vmem [thread:$0]  %s0, 256, %s17, [#allocation3], 128, 128, 8
    $region5: #{tpu_custom_call.1} parent=1 // pred_fallthru
      _
    // Predicated region
    $region6: #{tpu_custom_call.1} parent=1 // pred_check
      _
    $region7: #{tpu_custom_call.1} parent=1 // pred_check_branch
      %24 = sbr.rel (0) target = $region9
    $region8: #{tpu_custom_call.1} parent=1 // pred_region
      %s26 = ssub.s32 4096, 4096
      %27 = vsyncadd [#allocation6], %s26
      %s28 = sshll.u32 [#allocation5], 4
      %s29 = int_to_ptr.vmem [resolvable:$true] %s28
      %34 = dma.hbm_to_vmem [thread:$0]  %s1, 4096, %s29, [#allocation6], 128, 128, 8
    $region9: #{tpu_custom_call.1} parent=1 // pred_fallthru
      _
    // Predicated region
    $region10: #{tpu_custom_call.1} parent=1 // pred_check
      _
    $region11: #{tpu_custom_call.1} parent=1 // pred_check_branch
      %36 = sbr.rel (0) target = $region13
    $region12: #{tpu_custom_call.1} parent=1 // pred_region
      _
    $region13: #{tpu_custom_call.1} parent=1 // pred_fallthru
      _
    // Predicated region
    $region14: #{tpu_custom_call.1} parent=1 // pred_check
      _
    $region15: #{tpu_custom_call.1} parent=1 // pred_check_branch
      %38 = sbr.rel (0) target = $region17
    $region16: #{tpu_custom_call.1} parent=1 // pred_region
      %39 = dma.done [#allocation3], 256
    $region17: #{tpu_custom_call.1} parent=1 // pred_fallthru
      _
    // Predicated region
    $region18: #{tpu_custom_call.1} parent=1 // pred_check
      _
    $region19: #{tpu_custom_call.1} parent=1 // pred_check_branch
      %41 = sbr.rel (0) target = $region21
    $region20: #{tpu_custom_call.1} parent=1 // pred_region
      %42 = dma.done [#allocation6], 4096
    $region21: #{tpu_custom_call.1} parent=1 // pred_fallthru
      _
    %v43 = vld [vmem:[#allocation2] sm:$0xff]
    %v44 = vld [vmem:[#allocation2 + $0x8] sm:$0xff]
    %v45 = vld [vmem:[#allocation5] sm:$0xff]
    %v46 = vld [vmem:[#allocation5 + $0x8] sm:$0xff]
    %v47 = vld [vmem:[#allocation5 + $0x10] sm:$0xff]
    %v48 = vld [vmem:[#allocation5 + $0x18] sm:$0xff]
    %v49 = vld [vmem:[#allocation5 + $0x20] sm:$0xff]
    %v50 = vld [vmem:[#allocation5 + $0x28] sm:$0xff]
    %v51 = vld [vmem:[#allocation5 + $0x30] sm:$0xff]
    %v52 = vld [vmem:[#allocation5 + $0x38] sm:$0xff]
    %v53 = vld [vmem:[#allocation5 + $0x40] sm:$0xff]
    %v54 = vld [vmem:[#allocation5 + $0x48] sm:$0xff]
    %v55 = vld [vmem:[#allocation5 + $0x50] sm:$0xff]
    %v56 = vld [vmem:[#allocation5 + $0x58] sm:$0xff]
    %v57 = vld [vmem:[#allocation5 + $0x60] sm:$0xff]
    %v58 = vld [vmem:[#allocation5 + $0x68] sm:$0xff]
    %v59 = vld [vmem:[#allocation5 + $0x70] sm:$0xff]
    %v60 = vld [vmem:[#allocation5 + $0x78] sm:$0xff]
    %v61 = vld [vmem:[#allocation5 + $0x80] sm:$0xff]
    %v62 = vld [vmem:[#allocation5 + $0x88] sm:$0xff]
    %v63 = vld [vmem:[#allocation5 + $0x90] sm:$0xff]
    %v64 = vld [vmem:[#allocation5 + $0x98] sm:$0xff]
    %v65 = vld [vmem:[#allocation5 + $0xa0] sm:$0xff]
    %v66 = vld [vmem:[#allocation5 + $0xa8] sm:$0xff]
    %v67 = vld [vmem:[#allocation5 + $0xb0] sm:$0xff]
    %v68 = vld [vmem:[#allocation5 + $0xb8] sm:$0xff]
    %v69 = vld [vmem:[#allocation5 + $0xc0] sm:$0xff]
    %v70 = vld [vmem:[#allocation5 + $0xc8] sm:$0xff]
    %v71 = vld [vmem:[#allocation5 + $0xd0] sm:$0xff]
    %v72 = vld [vmem:[#allocation5 + $0xd8] sm:$0xff]
    %v73 = vld [vmem:[#allocation5 + $0xe0] sm:$0xff]
    %v74 = vld [vmem:[#allocation5 + $0xe8] sm:$0xff]
    %v75 = vld [vmem:[#allocation5 + $0xf0] sm:$0xff]
    %v76 = vld [vmem:[#allocation5 + $0xf8] sm:$0xff]
    %v77 = vld [vmem:[%s2] sm:$0x3]
    %v79 = vlaneseq
    %v80 = vshrl.u32 %v79, 7
    %v81 = vsub.s32 0, %v80
    %v82 = vrot.slane %v77, %v81
    %v83 = vlaneseq
    %v84 = vshrl.u32 %v83, 7
    %v85 = vsub.s32 1, %v84
    %v86 = vrot.slane %v77, %v85
    %89 = vmatprep.subr.mxu0 0.0
    %90 = vmatpush1.xpose.msra.mxu0 %v60
    %91 = vmatprep.subr.mxu0 0.0
    %92 = vmatpush1.xpose.msra.mxu0 %v59
    %93 = vmatprep.subr.mxu0 0.0
    %94 = vmatpush1.xpose.msra.mxu0 %v58
    %95 = vmatprep.subr.mxu0 0.0
    %96 = vmatpush1.xpose.msra.mxu0 %v57
    %97 = vmatprep.subr.mxu0 0.0
    %98 = vmatpush1.xpose.msra.mxu0 %v56
    %99 = vmatprep.subr.mxu0 0.0
    %100 = vmatpush1.xpose.msra.mxu0 %v55
    %101 = vmatprep.subr.mxu0 0.0
    %102 = vmatpush1.xpose.msra.mxu0 %v54
    %103 = vmatprep.subr.mxu0 0.0
    %104 = vmatpush1.xpose.msra.mxu0 %v53
    %105 = vmatprep.subr.mxu0 0.0
    %106 = vmatpush1.xpose.msra.mxu0 %v52
    %107 = vmatprep.subr.mxu0 0.0
    %108 = vmatpush1.xpose.msra.mxu0 %v51
    %109 = vmatprep.subr.mxu0 0.0
    %110 = vmatpush1.xpose.msra.mxu0 %v50
    %111 = vmatprep.subr.mxu0 0.0
    %112 = vmatpush1.xpose.msra.mxu0 %v49
    %113 = vmatprep.subr.mxu0 0.0
    %114 = vmatpush1.xpose.msra.mxu0 %v48
    %115 = vmatprep.subr.mxu0 0.0
    %116 = vmatpush1.xpose.msra.mxu0 %v47
    %117 = vmatprep.subr.mxu0 0.0
    %118 = vmatpush1.xpose.msra.mxu0 %v46
    %119 = vmatprep.subr.mxu0 0.0
    %120 = vmatpush1.xpose.msra.mxu0 %v45
    %121 = vmatprep.subr.mxu0 0.0
    %122 = vmatpush2.xpose.msra.mxu0 %v76
    %123 = vmatprep.subr.mxu0 0.0
    %124 = vmatpush2.xpose.msra.mxu0 %v75
    %125 = vmatprep.subr.mxu0 0.0
    %126 = vmatpush2.xpose.msra.mxu0 %v74
    %127 = vmatprep.subr.mxu0 0.0
    %128 = vmatpush2.xpose.msra.mxu0 %v73
    %129 = vmatprep.subr.mxu0 0.0
    %130 = vmatpush2.xpose.msra.mxu0 %v72
    %131 = vmatprep.subr.mxu0 0.0
    %132 = vmatpush2.xpose.msra.mxu0 %v71
    %133 = vmatprep.subr.mxu0 0.0
    %134 = vmatpush2.xpose.msra.mxu0 %v70
    %135 = vmatprep.subr.mxu0 0.0
    %136 = vmatpush2.xpose.msra.mxu0 %v69
    %137 = vmatprep.subr.mxu0 0.0
    %138 = vmatpush2.xpose.msra.mxu0 %v68
    %139 = vmatprep.subr.mxu0 0.0
    %140 = vmatpush2.xpose.msra.mxu0 %v67
    %141 = vmatprep.subr.mxu0 0.0
    %142 = vmatpush2.xpose.msra.mxu0 %v66
    %143 = vmatprep.subr.mxu0 0.0
    %144 = vmatpush2.xpose.msra.mxu0 %v65
    %145 = vmatprep.subr.mxu0 0.0
    %146 = vmatpush2.xpose.msra.mxu0 %v64
    %147 = vmatprep.subr.mxu0 0.0
    %148 = vmatpush2.xpose.msra.mxu0 %v63
    %149 = vmatprep.subr.mxu0 0.0
    %150 = vmatpush2.xpose.msra.mxu0 %v62
    %151 = vmatprep.subr.mxu0 0.0
    %152 = vmatpush2.xpose.msra.mxu0 %v61
    %153 = vmatprep.mubr.f32.mxu0 0.0
    %154 = vmatmul.mubr.f32.gmra.mxu0 %v43
    %v155 = vpop.f32.mrf.mxu0
    %v156 = vadd.f32 %v82, %v155
    %v157 = vpop.f32.mrf.mxu0
    %v158 = vadd.f32 %v86, %v157
    %159 = vmatprep.mubr.f32.mxu0 0.0
    %160 = vmatmul.mubr.f32.gmra.mxu0 %v44
    %v161 = vpop.f32.mrf.mxu0
    %v162 = vadd.f32 %v82, %v161
    %v163 = vpop.f32.mrf.mxu0
    %v164 = vadd.f32 %v86, %v163
    %165 = vdwg.mxu0
    %166 = vst [vmem:[#allocation7] sm:$0xff] %v156
    %167 = vst [vmem:[#allocation7 + $0x8] sm:$0xff] %v158
    %168 = vst [vmem:[#allocation7 + $0x10] sm:$0xff] %v162
    %169 = vst [vmem:[#allocation7 + $0x18] sm:$0xff] %v164
    // Predicated region
    $region22: #{tpu_custom_call.1} parent=1 // pred_check
      _
    $region23: #{tpu_custom_call.1} parent=1 // pred_check_branch
      %171 = sbr.rel (0) target = $region25
    $region24: #{tpu_custom_call.1} parent=1 // pred_region
      %s173 = ssub.s32 512, 512
      %174 = vsyncadd [#allocation4], %s173
      %s175 = sshll.u32 [#allocation7], 4
      %s176 = int_to_ptr.vmem [resolvable:$true] %s175
      %181 = dma.vmem_to_hbm [thread:$0]  %s176, 512, %s3, [#allocation4], 256, 256, 16
    $region25: #{tpu_custom_call.1} parent=1 // pred_fallthru
      _
    // Predicated region
    $region26: #{tpu_custom_call.1} parent=1 // pred_check
      _
    $region27: #{tpu_custom_call.1} parent=1 // pred_check_branch
      %183 = sbr.rel (0) target = $region29
    $region28: #{tpu_custom_call.1} parent=1 // pred_region
      %184 = dma.done [#allocation4], 512
    $region29: #{tpu_custom_call.1} parent=1 // pred_fallthru
      _
    %185 = vsyncpa [#allocation3], 1
    %186 = vsyncpa [#allocation6], 1
    %187 = vsyncpa [#allocation4], 1

</llo_original>
